<compile_context>
chip_gen: v7x
topology: tpu7x:2x2x1
jax: 0.10.0
libtpu: 0.0.40
codegen_flags: <defaults>
</compile_context>

<pallas_src>
import math
import jax
import jax.numpy as jnp
from jax.experimental import pallas as pl
from jax.experimental.pallas import tpu as pltpu


def _round_up(x, m):
    return (x + m - 1) // m * m


def _vmem_capacity_bytes():
    """Physical VMEM of the current chip; conservative fallback if unknown."""
    try:
        return int(pltpu.get_tpu_info().vmem_capacity_bytes)
    except Exception:
        return 64 * 2**20  # v7x per-TC size: safe lower bound on all gens


def _pick_feature_tile(dims):
    """Largest tile in {512,256,128} dividing every 128-rounded feature dim."""
    for t in (512, 256, 128):
        if all(_round_up(d, 128) % t == 0 for d in dims):
            return t
    return 128


# ---- index maps (grid = (batch_tile b, step s); 7 scalar-prefetch tables) --
def _x_map(b, s, *prefetch):
    return (b, 0)


def _w_map(b, s, *prefetch):
    return (s, 0, 0)


def _b_map(b, s, bias_idx, *prefetch):
    return (bias_idx[s], 0, 0)


def _o_map(b, s, *prefetch):
    return (b, 0)


def _mlp_fused_kernel(bias_idx, k_off, n_off, first_k, last_k, parity,
                      last_layer, x_ref, w_ref, b_ref, o_ref, act_ref,
                      acc_ref):
    """One grid step = one (layer, n_tile, k_tile) weight tile.

    act_ref : (2*tm, F_act) ping-pong activation scratch (compute dtype)
    acc_ref : (tm, tf) f32 accumulator for the current (layer, n_tile)
    """
    s = pl.program_id(1)
    tm = acc_ref.shape[0]
    tk, tn = w_ref.shape
    k0_in = x_ref.shape[1]

    # Stage the (padded) input batch tile into ping-pong half 0 once per batch
    # tile (first step == start of layer 0).
    @pl.when(s == 0)
    def _():
        act_ref[0:tm, 0:k0_in] = x_ref[...].astype(act_ref.dtype)

    p_in = parity[s]                       # layer % 2 -> which half we read
    row_in = pl.multiple_of(p_in * tm, 8)
    row_out = pl.multiple_of((1 - p_in) * tm, 8)
    c_in = pl.multiple_of(k_off[s], 128)   # input-feature column of this K tile
    c_out = pl.multiple_of(n_off[s], 128)  # output-feature column of this N tile

    # (tm, tk) activation column slab @ (tk, tn) weight tile -> f32 partial.
    a = act_ref[pl.ds(row_in, tm), pl.ds(c_in, tk)]
    partial = jnp.dot(a, w_ref[...], preferred_element_type=jnp.float32)

    @pl.when(first_k[s] == 1)
    def _():
        acc_ref[...] = jnp.zeros_like(acc_ref)

    acc_ref[...] += partial

    # Last K tile of this (layer, n_tile): bias + ReLU, then write the
    # lane-dense column slab either into the other ping-pong half (hidden
    # layers) or straight into the resident output block (last layer).
    @pl.when(last_k[s] == 1)
    def _():
        y = jnp.maximum(acc_ref[...] + b_ref[...].astype(jnp.float32), 0.0)

        @pl.when(last_layer[s] == 0)
        def _():
            act_ref[pl.ds(row_out, tm), pl.ds(c_out, tn)] = y.astype(
                act_ref.dtype)

        @pl.when(last_layer[s] == 1)
        def _():
            o_ref[:, pl.ds(c_out, tn)] = y.astype(o_ref.dtype)


def pack_params(params, compute_dtype=None):
    """Pack per-layer (w [K,N], b [N]) into a (S, tf, tf) weight-tile stream,
    a (T, 1, tf) bias-tile stream and per-step int32 schedule tables.

    Each layer is padded to (round_up(K, tf), round_up(N, tf)) independently,
    so no global-F_pad inflation of FLOPs / weight bytes."""
    if compute_dtype is None:
        compute_dtype = params[0][0].dtype
    n_layers = len(params)
    feat_dims = [params[0][0].shape[0]] + [w.shape[1] for w, _ in params]
    tf = _pick_feature_tile(feat_dims)

    w_tiles, b_tiles = [], []
    sched = {k: [] for k in
             ("bias", "koff", "noff", "firstk", "lastk", "parity", "lastl")}
    flops_per_row = 0
    for i, (w, b) in enumerate(params):
        k_dim, n_dim = w.shape
        kp, np_ = _round_up(k_dim, tf), _round_up(n_dim, tf)
        flops_per_row += 2 * kp * np_
        wp = jnp.zeros((kp, np_), compute_dtype).at[:k_dim, :n_dim].set(
            w.astype(compute_dtype))
        bp = jnp.zeros((1, np_), compute_dtype).at[0, :n_dim].set(
            b.reshape(-1).astype(compute_dtype))
        kt, nt = kp // tf, np_ // tf
        for j in range(nt):
            b_tiles.append(bp[:, j * tf:(j + 1) * tf])
            for k in range(kt):
                w_tiles.append(wp[k * tf:(k + 1) * tf, j * tf:(j + 1) * tf])
                sched["bias"].append(len(b_tiles) - 1)
                sched["koff"].append(k * tf)
                sched["noff"].append(j * tf)
                sched["firstk"].append(int(k == 0))
                sched["lastk"].append(int(k == kt - 1))
                sched["parity"].append(i % 2)
                sched["lastl"].append(int(i == n_layers - 1))

    w_stream = jnp.stack(w_tiles)                        # (S, tf, tf)
    b_stream = jnp.stack(b_tiles)                        # (T, 1, tf)
    tables = {k: jnp.asarray(v, jnp.int32) for k, v in sched.items()}
    geom = dict(
        tf=tf,
        k0_pad=_round_up(feat_dims[0], tf),
        n_last_pad=_round_up(feat_dims[-1], tf),
        f_act=max(_round_up(d, tf) for d in feat_dims),
        flops_per_row=flops_per_row,
    )
    return w_stream, b_stream, tables, geom


def mlp_block_forward(x, params, *, compute_dtype=None, tm=None):
    """Forward pass of MLPBlock (Linear -> ReLU per layer), fully fused."""
    m, k_in = x.shape
    out_size = params[-1][0].shape[1]
    w_stream, b_stream, tbl, geom = pack_params(params, compute_dtype)
    tf, k0p = geom["tf"], geom["k0_pad"]
    n_last_p, f_act = geom["n_last_pad"], geom["f_act"]
    n_steps = int(w_stream.shape[0])
    cdt = w_stream.dtype
    out_dtype = x.dtype

    bpe_x = jnp.dtype(x.dtype).itemsize
    bpe_c = jnp.dtype(cdt).itemsize
    bpe_o = jnp.dtype(out_dtype).itemsize
    # Native packed sublane count of the narrowest dtype on the batch axis.
    sub = 8 * (4 // min(bpe_x, bpe_c, bpe_o))

    cap = _vmem_capacity_bytes()
    # User-buffer budget: ~92 MiB on 128 MiB chips (v5e/v6e), ~40 MiB on v7x.
    budget = min(int(0.72 * cap), cap - 24 * 2**20)

    def vmem_est(t):
        return (2 * t * k0p * bpe_x          # x tile (double-buffered)
                + 2 * tf * tf * bpe_c        # weight tile (double-buffered)
                + 2 * 8 * tf * bpe_c         # bias tile (sublane-padded)
                + 2 * t * n_last_p * bpe_o   # output tile
                + 2 * t * f_act * bpe_c      # ping-pong activation scratch
                + t * tf * 4)                # f32 accumulator

    if tm is None:
        tm = sub
        for cand in (1024, 768, 512, 384, 256, 192, 128, 64, 32, 16, 8):
            if cand % sub == 0 and vmem_est(cand) <= budget:
                tm = cand
                break
        # Balance the batch across tiles: avoids over-padding a ragged final
        # tile and gives >=2 batch tiles (both v7x TensorCores) for large m.
        n_bt = max(1, -(-m // tm))
        tm = max(sub, min(tm, _round_up(-(-m // n_bt), sub)))
    m_pad = _round_up(m, tm)
    n_bt = m_pad // tm

    # Zero-pad batch rows and input features (padded weight rows/cols are
    # zero, bias pad is zero, so real outputs are unaffected; sliced at end).
    x_p = jnp.zeros((m_pad, k0p), x.dtype).at[:m, :k_in].set(x)

    vmem_limit = int(min(cap - 12 * 2**20,
                         max(32 * 2**20, 2 * vmem_est(tm))))

    cost = pl.CostEstimate(
        flops=int(geom["flops_per_row"]) * int(m_pad),
        transcendentals=0,
        bytes_accessed=int(m_pad * k0p * bpe_x
                           + n_bt * (w_stream.size + b_stream.size) * bpe_c
                           + m_pad * n_last_p * bpe_o))

    grid_spec = pltpu.PrefetchScalarGridSpec(
        num_scalar_prefetch=7,
        grid=(n_bt, n_steps),
        in_specs=[
            # padded input batch tile (resident across the step axis)
            pl.BlockSpec((tm, k0p), _x_map),
            # current (tf, tf) weight tile of the flat stream
            pl.BlockSpec((None, tf, tf), _w_map),
            # bias tile of the current (layer, n_tile)
            pl.BlockSpec((None, 1, tf), _b_map),
        ],
        # output block resident across the step axis -> one writeback per b
        out_specs=pl.BlockSpec((tm, n_last_p), _o_map),
        scratch_shapes=[pltpu.VMEM((2 * tm, f_act), cdt),
                        pltpu.VMEM((tm, tf), jnp.float32)],
    )

    out_p = pl.pallas_call(
        _mlp_fused_kernel,
        out_shape=jax.ShapeDtypeStruct((m_pad, n_last_p), out_dtype),
        grid_spec=grid_spec,
        compiler_params=pltpu.CompilerParams(
            dimension_semantics=("parallel", "arbitrary"),
            vmem_limit_bytes=vmem_limit),
        cost_estimate=cost,
    )(tbl["bias"], tbl["koff"], tbl["noff"], tbl["firstk"], tbl["lastk"],
      tbl["parity"], tbl["lastl"], x_p, w_stream, b_stream)

    return out_p[:m, :out_size]


def init_mlp_params(key, in_size, layer_sizes, dtype=jnp.float32):
    """He-normal weights, zero biases (kernel_initializer='he_normal',
    bias_initializer='zeros').  Weights stored [in, out] (pre-transposed)."""
    params = []
    for out_size in layer_sizes:
        key, wk = jax.random.split(key)
        std = math.sqrt(2.0 / in_size)  # he_normal, fan_in
        w = (jax.random.normal(wk, (in_size, out_size), dtype=jnp.float32)
             * std).astype(dtype)
        b = jnp.zeros((out_size,), dtype=dtype)
        params.append((w, b))
        in_size = out_size
    return params


if __name__ == "__main__":
    key = jax.random.PRNGKey(0)
    batch = 8
    in_size = 32
    layer_sizes = (64, 32)

    kx, kp = jax.random.split(key)
    x = jax.random.normal(kx, (batch, in_size), dtype=jnp.float32)
    params = init_mlp_params(kp, in_size, layer_sizes, dtype=jnp.float32)

    out = jax.block_until_ready(mlp_block_forward(x, params))

    # Pure-JAX reference: ReLU after every Linear, incl. the last (matches the
    # PyTorch MLPBlock, which appends the activation after each layer).
    ref = x
    for (w, b) in params:
        ref = jnp.maximum(ref @ w + b, 0.0)
    assert out.shape == (batch, layer_sizes[-1]), out.shape
    assert jnp.allclose(out, ref, atol=1e-4, rtol=1e-4), \
        float(jnp.max(jnp.abs(out - ref)))

    # bf16 weights/activations with f32 accumulation (loose tolerance check).
    params_bf16 = [(w.astype(jnp.bfloat16), b.astype(jnp.bfloat16))
                   for (w, b) in params]
    out_bf16 = jax.block_until_ready(mlp_block_forward(x, params_bf16))
    assert out_bf16.shape == (batch, layer_sizes[-1])
    assert jnp.allclose(out_bf16.astype(jnp.float32), ref, atol=1e-1, rtol=1e-1)

    print("KERNEL_OK")
</pallas_src>

<mosaic_0001>
module attributes {stable_mosaic.version = 11 : i64} {
  func.func @_mlp_fused_kernel(%arg0: i32, %arg1: i32, %arg2: memref<2xi32, #tpu.memory_space<smem>>, %arg3: memref<2xi32, #tpu.memory_space<smem>>, %arg4: memref<2xi32, #tpu.memory_space<smem>>, %arg5: memref<2xi32, #tpu.memory_space<smem>>, %arg6: memref<2xi32, #tpu.memory_space<smem>>, %arg7: memref<2xi32, #tpu.memory_space<smem>>, %arg8: memref<2xi32, #tpu.memory_space<smem>>, %arg9: memref<8x128xf32, #tpu.memory_space<vmem>>, %arg10: memref<1x128x128xf32, #tpu.memory_space<vmem>>, %arg11: memref<1x1x128xf32, #tpu.memory_space<vmem>>, %arg12: memref<8x128xf32, #tpu.memory_space<vmem>>, %arg13: memref<16x128xf32, #tpu.memory_space<vmem>>, %arg14: memref<8x128xf32, #tpu.memory_space<vmem>>) attributes {dimension_semantics = [#tpu.dimension_semantics<parallel>, #tpu.dimension_semantics<arbitrary>], iteration_bounds = array<i64: 1, 2>, scalar_prefetch = 7 : i64, scratch_operands = 2 : i64, tpu.core_type = #tpu.core_type<tc>, window_params = [{transform_indices = @transform_0, window_bounds = array<i64: 8, 128>}, {transform_indices = @transform_1, window_bounds = array<i64: 1, 128, 128>}, {transform_indices = @transform_2, window_bounds = array<i64: 1, 1, 128>}, {transform_indices = @transform_3, window_bounds = array<i64: 8, 128>}]} {
    %c0_i32 = arith.constant 0 : i32
    %0 = arith.cmpi eq, %arg1, %c0_i32 : i32
    %1 = arith.extui %0 : i1 to i32
    %c0_i32_0 = arith.constant 0 : i32
    %2 = arith.cmpi ne, %1, %c0_i32_0 : i32
    scf.if %2 {
      %c0_12 = arith.constant 0 : index
      %c0_13 = arith.constant 0 : index
      %35 = vector.load %arg9[%c0_12, %c0_13] : memref<8x128xf32, #tpu.memory_space<vmem>>, vector<8x128xf32>
      %c0_14 = arith.constant 0 : index
      %c0_15 = arith.constant 0 : index
      %36 = vector.load %arg13[%c0_14, %c0_15] : memref<16x128xf32, #tpu.memory_space<vmem>>, vector<8x128xf32>
      tpu.vector_store %arg13[%c0_14, %c0_15], %35 {strides = array<i32>} : memref<16x128xf32, #tpu.memory_space<vmem>>, vector<8x128xf32>,
    } else {
    }
    %3 = arith.index_cast %arg1 : i32 to index
    %4 = memref.load %arg7[%3] : memref<2xi32, #tpu.memory_space<smem>>
    %c8_i32 = arith.constant 8 : i32
    %5 = arith.muli %4, %c8_i32 : i32
    %6 = tpu.assume_multiple %5, 8 : i32
    %c1_i32 = arith.constant 1 : i32
    %7 = arith.subi %c1_i32, %4 : i32
    %c8_i32_1 = arith.constant 8 : i32
    %8 = arith.muli %7, %c8_i32_1 : i32
    %9 = tpu.assume_multiple %8, 8 : i32
    %10 = arith.index_cast %arg1 : i32 to index
    %11 = memref.load %arg3[%10] : memref<2xi32, #tpu.memory_space<smem>>
    %12 = tpu.assume_multiple %11, 128 : i32
    %13 = arith.index_cast %arg1 : i32 to index
    %14 = memref.load %arg4[%13] : memref<2xi32, #tpu.memory_space<smem>>
    %15 = tpu.assume_multiple %14, 128 : i32
    %16 = arith.index_cast %6 : i32 to index
    %17 = arith.index_cast %12 : i32 to index
    %18 = vector.load %arg13[%16, %17] : memref<16x128xf32, #tpu.memory_space<vmem>>, vector<8x128xf32>
    %c0 = arith.constant 0 : index
    %c0_2 = arith.constant 0 : index
    %c0_3 = arith.constant 0 : index
    %19 = vector.load %arg10[%c0, %c0_2, %c0_3] : memref<1x128x128xf32, #tpu.memory_space<vmem>>, vector<1x128x128xf32>
    %20 = vector.shape_cast %19 : vector<1x128x128xf32> to vector<128x128xf32>
    %cst = arith.constant dense<0.000000e+00> : vector<8x128xf32>
    %21 = tpu.matmul %18, %20, %cst {dimension_numbers = #tpu.dot_dimension_numbers<[1], [0], [0], [1], [0, 0, 1, 1], [], []>} : vector<8x128xf32>, vector<128x128xf32>, vector<8x128xf32> -> vector<8x128xf32>
    %22 = arith.index_cast %arg1 : i32 to index
    %23 = memref.load %arg5[%22] : memref<2xi32, #tpu.memory_space<smem>>
    %c1_i32_4 = arith.constant 1 : i32
    %24 = arith.cmpi eq, %23, %c1_i32_4 : i32
    %25 = arith.extui %24 : i1 to i32
    %c0_i32_5 = arith.constant 0 : i32
    %26 = arith.cmpi ne, %25, %c0_i32_5 : i32
    scf.if %26 {
      %cst_12 = arith.constant 0.000000e+00 : f32
      %35 = vector.broadcast %cst_12 : f32 to vector<8x128xf32>
      %c0_13 = arith.constant 0 : index
      %c0_14 = arith.constant 0 : index
      %36 = vector.load %arg14[%c0_13, %c0_14] : memref<8x128xf32, #tpu.memory_space<vmem>>, vector<8x128xf32>
      tpu.vector_store %arg14[%c0_13, %c0_14], %35 {strides = array<i32>} : memref<8x128xf32, #tpu.memory_space<vmem>>, vector<8x128xf32>,
    } else {
    }
    %c0_6 = arith.constant 0 : index
    %c0_7 = arith.constant 0 : index
    %27 = vector.load %arg14[%c0_6, %c0_7] : memref<8x128xf32, #tpu.memory_space<vmem>>, vector<8x128xf32>
    %28 = arith.addf %27, %21 : vector<8x128xf32>
    %c0_8 = arith.constant 0 : index
    %c0_9 = arith.constant 0 : index
    %29 = vector.load %arg14[%c0_8, %c0_9] : memref<8x128xf32, #tpu.memory_space<vmem>>, vector<8x128xf32>
    tpu.vector_store %arg14[%c0_8, %c0_9], %28 {strides = array<i32>} : memref<8x128xf32, #tpu.memory_space<vmem>>, vector<8x128xf32>,
    %30 = arith.index_cast %arg1 : i32 to index
    %31 = memref.load %arg6[%30] : memref<2xi32, #tpu.memory_space<smem>>
    %c1_i32_10 = arith.constant 1 : i32
    %32 = arith.cmpi eq, %31, %c1_i32_10 : i32
    %33 = arith.extui %32 : i1 to i32
    %c0_i32_11 = arith.constant 0 : i32
    %34 = arith.cmpi ne, %33, %c0_i32_11 : i32
    scf.if %34 {
      %c0_12 = arith.constant 0 : index
      %c0_13 = arith.constant 0 : index
      %35 = vector.load %arg14[%c0_12, %c0_13] : memref<8x128xf32, #tpu.memory_space<vmem>>, vector<8x128xf32>
      %c0_14 = arith.constant 0 : index
      %c0_15 = arith.constant 0 : index
      %c0_16 = arith.constant 0 : index
      %36 = vector.load %arg11[%c0_14, %c0_15, %c0_16] : memref<1x1x128xf32, #tpu.memory_space<vmem>>, vector<1x1x128xf32>
      %37 = vector.shape_cast %36 : vector<1x1x128xf32> to vector<1x128xf32>
      %38 = vector.broadcast %37 : vector<1x128xf32> to vector<8x128xf32>
      %39 = arith.addf %35, %38 : vector<8x128xf32>
      %cst_17 = arith.constant 0.000000e+00 : f32
      %40 = vector.broadcast %cst_17 : f32 to vector<8x128xf32>
      %41 = arith.maximumf %39, %40 : vector<8x128xf32>
      %42 = arith.index_cast %arg1 : i32 to index
      %43 = memref.load %arg8[%42] : memref<2xi32, #tpu.memory_space<smem>>
      %c0_i32_18 = arith.constant 0 : i32
      %44 = arith.cmpi eq, %43, %c0_i32_18 : i32
      %45 = arith.extui %44 : i1 to i32
      %c0_i32_19 = arith.constant 0 : i32
      %46 = arith.cmpi ne, %45, %c0_i32_19 : i32
      scf.if %46 {
        %52 = arith.index_cast %9 : i32 to index
        %53 = arith.index_cast %15 : i32 to index
        %54 = vector.load %arg13[%52, %53] : memref<16x128xf32, #tpu.memory_space<vmem>>, vector<8x128xf32>
        tpu.vector_store %arg13[%52, %53], %41 {strides = array<i32>} : memref<16x128xf32, #tpu.memory_space<vmem>>, vector<8x128xf32>,
      } else {
      }
      %47 = arith.index_cast %arg1 : i32 to index
      %48 = memref.load %arg8[%47] : memref<2xi32, #tpu.memory_space<smem>>
      %c1_i32_20 = arith.constant 1 : i32
      %49 = arith.cmpi eq, %48, %c1_i32_20 : i32
      %50 = arith.extui %49 : i1 to i32
      %c0_i32_21 = arith.constant 0 : i32
      %51 = arith.cmpi ne, %50, %c0_i32_21 : i32
      scf.if %51 {
        %c0_22 = arith.constant 0 : index
        %52 = arith.index_cast %15 : i32 to index
        %53 = vector.load %arg12[%c0_22, %52] : memref<8x128xf32, #tpu.memory_space<vmem>>, vector<8x128xf32>
        tpu.vector_store %arg12[%c0_22, %52], %41 {strides = array<i32>} : memref<8x128xf32, #tpu.memory_space<vmem>>, vector<8x128xf32>,
      } else {
      }
    } else {
    }
    return
  }
  func.func @transform_0(%arg0: i32, %arg1: i32, %arg2: memref<2xi32, #tpu.memory_space<smem>>, %arg3: memref<2xi32, #tpu.memory_space<smem>>, %arg4: memref<2xi32, #tpu.memory_space<smem>>, %arg5: memref<2xi32, #tpu.memory_space<smem>>, %arg6: memref<2xi32, #tpu.memory_space<smem>>, %arg7: memref<2xi32, #tpu.memory_space<smem>>, %arg8: memref<2xi32, #tpu.memory_space<smem>>) -> (i32, i32) {
    %c0_i32 = arith.constant 0 : i32
    %c0_i32_0 = arith.constant 0 : i32
    return %arg0, %c0_i32 : i32, i32
  }
  func.func @transform_1(%arg0: i32, %arg1: i32, %arg2: memref<2xi32, #tpu.memory_space<smem>>, %arg3: memref<2xi32, #tpu.memory_space<smem>>, %arg4: memref<2xi32, #tpu.memory_space<smem>>, %arg5: memref<2xi32, #tpu.memory_space<smem>>, %arg6: memref<2xi32, #tpu.memory_space<smem>>, %arg7: memref<2xi32, #tpu.memory_space<smem>>, %arg8: memref<2xi32, #tpu.memory_space<smem>>) -> (i32, i32, i32) {
    %c0_i32 = arith.constant 0 : i32
    %c0_i32_0 = arith.constant 0 : i32
    %c0_i32_1 = arith.constant 0 : i32
    return %arg1, %c0_i32, %c0_i32_0 : i32, i32, i32
  }
  func.func @transform_2(%arg0: i32, %arg1: i32, %arg2: memref<2xi32, #tpu.memory_space<smem>>, %arg3: memref<2xi32, #tpu.memory_space<smem>>, %arg4: memref<2xi32, #tpu.memory_space<smem>>, %arg5: memref<2xi32, #tpu.memory_space<smem>>, %arg6: memref<2xi32, #tpu.memory_space<smem>>, %arg7: memref<2xi32, #tpu.memory_space<smem>>, %arg8: memref<2xi32, #tpu.memory_space<smem>>) -> (i32, i32, i32) {
    %0 = arith.index_cast %arg1 : i32 to index
    %1 = memref.load %arg2[%0] : memref<2xi32, #tpu.memory_space<smem>>
    %c0_i32 = arith.constant 0 : i32
    %c0_i32_0 = arith.constant 0 : i32
    %c0_i32_1 = arith.constant 0 : i32
    return %1, %c0_i32, %c0_i32_0 : i32, i32, i32
  }
  func.func @transform_3(%arg0: i32, %arg1: i32, %arg2: memref<2xi32, #tpu.memory_space<smem>>, %arg3: memref<2xi32, #tpu.memory_space<smem>>, %arg4: memref<2xi32, #tpu.memory_space<smem>>, %arg5: memref<2xi32, #tpu.memory_space<smem>>, %arg6: memref<2xi32, #tpu.memory_space<smem>>, %arg7: memref<2xi32, #tpu.memory_space<smem>>, %arg8: memref<2xi32, #tpu.memory_space<smem>>) -> (i32, i32) {
    %c0_i32 = arith.constant 0 : i32
    %c0_i32_0 = arith.constant 0 : i32
    return %arg0, %c0_i32 : i32, i32
  }
}

</mosaic_0001>

<llo_original>
// kernel: tpu_custom_call.1
$region0: #{tpu_custom_call.1}
  #allocation0 [shape = 'u32[]', space=smem, size = 0x4, offset = 0x4, fixed_abs, tag = 'smem constant byte address 0x4 - core index']
  #allocation1 [shape = 'u32[144,128]{1,0:T(1,128)}', space=vmem, size = 0x12000, scoped, tag = 'internal scratch']
  #allocation2 [shape = 'f32[16,128]{1,0:T(8,128)}', space=vmem, size = 0x2000, scoped, tag = 'scratch operand']
  #allocation3 [shape = 'f32[8,128]{1,0:T(8,128)}', space=vmem, size = 0x1000, scoped, tag = 'scratch operand']
  #allocation4 [shape = 's32[1]{0}', space=sflag, size = 0x4, scoped, tag = 'scoped memory for tpu_custom_call.1']
  #allocation5 [shape = 'u8[512]{0}', space=smem, size = 0x200, scoped, tag = 'prefetched SMEM operand 0']
  #allocation6 [shape = 'u8[512]{0}', space=smem, size = 0x200, scoped, tag = 'prefetched SMEM operand 1']
  #allocation7 [shape = 'u8[512]{0}', space=smem, size = 0x200, scoped, tag = 'prefetched SMEM operand 2']
  #allocation8 [shape = 'u8[512]{0}', space=smem, size = 0x200, scoped, tag = 'prefetched SMEM operand 3']
  #allocation9 [shape = 'u8[512]{0}', space=smem, size = 0x200, scoped, tag = 'prefetched SMEM operand 4']
  #allocation10 [shape = 'u8[512]{0}', space=smem, size = 0x200, scoped, tag = 'prefetched SMEM operand 5']
  #allocation11 [shape = 'u8[512]{0}', space=smem, size = 0x200, scoped, tag = 'prefetched SMEM operand 6']
  %s0 = inlined_call_operand.hbm [shape: s32[2], index: 0, kind: input, shape index: {}]
  %s1 = inlined_call_operand.vmem [shape: s32[2], index: 1, kind: input, shape index: {}]
  %s2 = inlined_call_operand.vmem [shape: s32[2], index: 2, kind: input, shape index: {}]
  %s3 = inlined_call_operand.vmem [shape: s32[2], index: 3, kind: input, shape index: {}]
  %s4 = inlined_call_operand.vmem [shape: s32[2], index: 4, kind: input, shape index: {}]
  %s5 = inlined_call_operand.vmem [shape: s32[2], index: 5, kind: input, shape index: {}]
  %s6 = inlined_call_operand.vmem [shape: s32[2], index: 6, kind: input, shape index: {}]
  %s7 = inlined_call_operand.vmem [shape: f32[8,128], index: 7, kind: input, shape index: {}]
  %s8 = inlined_call_operand.hbm [shape: f32[2,128,128], index: 8, kind: input, shape index: {}]
  %s9 = inlined_call_operand.vmem [shape: f32[2,1,128], index: 9, kind: input, shape index: {}]
  %s10 = inlined_call_operand.hbm [shape: f32[8,128], index: 10, kind: output, shape index: {}]
  %s11 = sld [smem:[#allocation0]]
  $region69: #{tpu_custom_call.1} parent=0
    _
  %s13 = ssub.s32 1, %s11
  %s14 = scalar_select 0, %s13, %s11
  %16 = dma.hbm_to_smem %s0, 16, [#allocation5], [#allocation4]
  %s17 = sshll.u32 %s1, 4
  %s18 = int_to_ptr.vmem [resolvable:$true] %s17
  %20 = dma.vmem_to_smem %s18, 16, [#allocation6], [#allocation4]
  %s21 = sshll.u32 %s2, 4
  %s22 = int_to_ptr.vmem [resolvable:$true] %s21
  %24 = dma.vmem_to_smem %s22, 16, [#allocation7], [#allocation4]
  %s25 = sshll.u32 %s3, 4
  %s26 = int_to_ptr.vmem [resolvable:$true] %s25
  %28 = dma.vmem_to_smem %s26, 16, [#allocation8], [#allocation4]
  %s29 = sshll.u32 %s4, 4
  %s30 = int_to_ptr.vmem [resolvable:$true] %s29
  %32 = dma.vmem_to_smem %s30, 16, [#allocation9], [#allocation4]
  %s33 = sshll.u32 %s5, 4
  %s34 = int_to_ptr.vmem [resolvable:$true] %s33
  %36 = dma.vmem_to_smem %s34, 16, [#allocation10], [#allocation4]
  %s37 = sshll.u32 %s6, 4
  %s38 = int_to_ptr.vmem [resolvable:$true] %s37
  %40 = dma.vmem_to_smem %s38, 16, [#allocation11], [#allocation4]
  %41 = dma.done [#allocation4], 112
  %42 = sfence
  $region1: #{tpu_custom_call.1} parent=0
    #allocation12 [shape = 'u8[131072]{0}', space=vmem, size = 0x20000, scoped, tag = 'input window, operand 8']
    #allocation13 [shape = 's32[2]{0}', space=sflag, size = 0x8, scoped, tag = 'scoped memory for tpu_custom_call.1']
    #allocation14 [shape = 's32[2]{0}', space=sflag, size = 0x8, scoped, tag = 'scoped memory for tpu_custom_call.1']
    #allocation15 [shape = 'u8[4096]{0}', space=vmem, size = 0x1000, scoped, tag = 'output window, operand 0, single buffered']
    %43 = vsyncpa [#allocation13], 0
    %s44 = scalar_lea.sflag [#allocation13], 1
    %45 = vsyncpa %s44, 0
    %46 = vsyncpa [#allocation14], 0
    loop: start=0, step=1, limit=4
    $region2: #{tpu_custom_call.1} parent=1 // loop_pre_header
      _
    $region3: #{tpu_custom_call.1} parent=1 // loop_header
      %s48 = sphi 0, %s52
      %p49 = scmp.ge.s32.totalorder %s48, 4
      %s55 = sphi 0, %s67
      %s56 = sphi 0, %s63
      %s57 = sphi 0, %s55
      %s58 = sphi 0, %s56
      %s59 = sphi 0, %s57
      %s60 = sphi 0, %s58
      %s70 = sphi 0, %s72
      %s73 = sphi 0, %s70
      %s74 = sphi 0, %s73
      %s90 = sphi 0, %s74
      %s96 = sphi 0, %s98
      %s99 = sphi 0, %s96
      %s100 = sphi 0, %s99
      %s116 = sphi 0, %s100
      %s124 = sphi 0, %s126
      %s127 = sphi 0, %s124
      %s128 = sphi 0, %s127
      %s144 = sphi 0, %s128
      %s150 = sphi 0, %s152
      %s153 = sphi 0, %s150
      %s154 = sphi 0, %s153
      %s170 = sphi 0, %s154
    $region4: #{tpu_custom_call.1} parent=1 // loop_header_branch
      %51 = sbr.rel (%p49) target = $region8
    $region5: #{tpu_custom_call.1} parent=1 // loop_body
      %s53 = ssub.s32 %s48, 1
      %s54 = ssub.s32 %s48, 2
      %s61 = sadd.s32 1, %s56
      %p62 = scmp.ge.s32.totalorder %s61, 2
      %s63 = scalar_select %p62, 0, %s61
      %s64 = sadd.s32 1, %s55
      %s65 = scalar_select %p62, %s64, %s55
      %p66 = scmp.ge.s32.totalorder %s65, 1
      %s67 = scalar_select %p66, 0, %s65
      %s68 = ssub.s32 %s55, %s67
      %p69 = scmp.eq.s32.totalorder %s68, 0
      %s71 = sadd.s32 %s70, 1
      %s72 = scalar_select %p69, %s70, %s71
      %p75 = pneg %p69
      %p76 = scmp.eq.s32.totalorder %s48, 1
      %p77 = por %p75, %p76
      %p78 = scmp.ne.s32.totalorder %s70, %s73
      %p79 = scmp.eq.s32.totalorder %s48, 0
      %p80 = por %p78, %p79
      %p81 = scmp.ne.s32.totalorder %s70, %s73
      %p82 = scmp.eq.s32.totalorder %s53, 1
      %p83 = por %p81, %p82
      %p84 = scmp.ne.s32.totalorder %s73, %s74
      %p85 = scmp.eq.s32.totalorder %s53, 0
      %p86 = por %p84, %p85
      %p87 = scmp.ne.s32.totalorder %s73, %s74
      %p88 = scmp.eq.s32.totalorder %s54, 1
      %p89 = por %p87, %p88
      %p91 = scmp.ne.s32.totalorder %s74, %s90
      %p92 = scmp.eq.s32.totalorder %s54, 0
      %p93 = por %p91, %p92
      %s94 = ssub.s32 %s56, %s63
      %p95 = scmp.eq.s32.totalorder %s94, 0
      %s97 = sadd.s32 %s96, 1
      %s98 = scalar_select %p95, %s96, %s97
      %p101 = pneg %p95
      %p102 = scmp.eq.s32.totalorder %s48, 1
      %p103 = por %p101, %p102
      %p104 = scmp.ne.s32.totalorder %s96, %s99
      %p105 = scmp.eq.s32.totalorder %s48, 0
      %p106 = por %p104, %p105
      %p107 = scmp.ne.s32.totalorder %s96, %s99
      %p108 = scmp.eq.s32.totalorder %s53, 1
      %p109 = por %p107, %p108
      %p110 = scmp.ne.s32.totalorder %s99, %s100
      %p111 = scmp.eq.s32.totalorder %s53, 0
      %p112 = por %p110, %p111
      %p113 = scmp.ne.s32.totalorder %s99, %s100
      %p114 = scmp.eq.s32.totalorder %s54, 1
      %p115 = por %p113, %p114
      %p117 = scmp.ne.s32.totalorder %s100, %s116
      %p118 = scmp.eq.s32.totalorder %s54, 0
      %p119 = por %p117, %p118
      %s120 = sld [smem:[#allocation5 + %s56]]
      %s121 = sld [smem:[#allocation5 + %s63]]
      %s122 = ssub.s32 %s120, %s121
      %p123 = scmp.eq.s32.totalorder %s122, 0
      %s125 = sadd.s32 %s124, 1
      %s126 = scalar_select %p123, %s124, %s125
      %p129 = pneg %p123
      %p130 = scmp.eq.s32.totalorder %s48, 1
      %p131 = por %p129, %p130
      %p132 = scmp.ne.s32.totalorder %s124, %s127
      %p133 = scmp.eq.s32.totalorder %s48, 0
      %p134 = por %p132, %p133
      %p135 = scmp.ne.s32.totalorder %s124, %s127
      %p136 = scmp.eq.s32.totalorder %s53, 1
      %p137 = por %p135, %p136
      %p138 = scmp.ne.s32.totalorder %s127, %s128
      %p139 = scmp.eq.s32.totalorder %s53, 0
      %p140 = por %p138, %p139
      %p141 = scmp.ne.s32.totalorder %s127, %s128
      %p142 = scmp.eq.s32.totalorder %s54, 1
      %p143 = por %p141, %p142
      %p145 = scmp.ne.s32.totalorder %s128, %s144
      %p146 = scmp.eq.s32.totalorder %s54, 0
      %p147 = por %p145, %p146
      %s148 = ssub.s32 %s55, %s67
      %p149 = scmp.eq.s32.totalorder %s148, 0
      %s151 = sadd.s32 %s150, 1
      %s152 = scalar_select %p149, %s150, %s151
      %p155 = pneg %p149
      %p156 = scmp.eq.s32.totalorder %s48, 1
      %p157 = por %p155, %p156
      %p158 = scmp.ne.s32.totalorder %s150, %s153
      %p159 = scmp.eq.s32.totalorder %s48, 0
      %p160 = por %p158, %p159
      %p161 = scmp.ne.s32.totalorder %s150, %s153
      %p162 = scmp.eq.s32.totalorder %s53, 1
      %p163 = por %p161, %p162
      %p164 = scmp.ne.s32.totalorder %s153, %s154
      %p165 = scmp.eq.s32.totalorder %s53, 0
      %p166 = por %p164, %p165
      %p167 = scmp.ne.s32.totalorder %s153, %s154
      %p168 = scmp.eq.s32.totalorder %s54, 1
      %p169 = por %p167, %p168
      %p171 = scmp.ne.s32.totalorder %s154, %s170
      %p172 = scmp.eq.s32.totalorder %s54, 0
      %p173 = por %p171, %p172
      %p174 = scmp.le.s32.totalorder 1, %s48
      %p175 = scmp.lt.s32.totalorder %s48, 3
      %p176 = pnand %p174, %p175
      %p177 = pneg %p176
      // Predicated region
      $region9: #{tpu_custom_call.1} parent=5 // pred_check
        _
      $region10: #{tpu_custom_call.1} parent=5 // pred_check_branch
        %179 = sbr.rel (%p176) target = $region12
      $region11: #{tpu_custom_call.1} parent=5 // pred_region
        %s180 = ssub.s32 %s48, 1
        // Predicated region
        $region13: #{tpu_custom_call.1} parent=11 // pred_check
          %p181 = pneg %p86
        $region14: #{tpu_custom_call.1} parent=11 // pred_check_branch
          %183 = sbr.rel (%p181) target = $region16
        $region15: #{tpu_custom_call.1} parent=11 // pred_region
          %p184 = scmp.lt.s32.totalorder %s57, 0
          %s185 = scalar_select %p184, %s57, 0
          %s186 = smul.addr %s185, 8
          %s187 = scalar_lea.vmem %s7, %s186
        $region16: #{tpu_custom_call.1} parent=11 // pred_fallthru
          _
      $region12: #{tpu_custom_call.1} parent=5 // pred_fallthru
        _
      %p188 = scmp.lt.s32.totalorder %s48, 2
      // Predicated region
      $region17: #{tpu_custom_call.1} parent=5 // pred_check
        %p189 = pneg %p188
      $region18: #{tpu_custom_call.1} parent=5 // pred_check_branch
        %191 = sbr.rel (%p189) target = $region20
      $region19: #{tpu_custom_call.1} parent=5 // pred_region
        // Predicated region
        $region21: #{tpu_custom_call.1} parent=19 // pred_check
          %p192 = pneg %p106
        $region22: #{tpu_custom_call.1} parent=19 // pred_check_branch
          %194 = sbr.rel (%p192) target = $region24
        $region23: #{tpu_custom_call.1} parent=19 // pred_region
          %s195 = sand.u32 %s96, 1
          %s196 = scalar_lea.sflag [#allocation13], %s195
          %s197 = sand.u32 %s96, 1
          %s198 = smul.addr %s197, 128
          %s199 = scalar_lea.vmem [#allocation12], %s198
          %s201 = ssub.s32 2048, 2048
          %202 = vsyncadd %s196, %s201
          %s203 = smul.addr %s56, 16
          %s204 = smul.addr %s203, 128
          %s205 = scalar_lea.hbm %s8, %s204
          %s206 = sshll.u32 %s199, 4
          %s207 = int_to_ptr.vmem [resolvable:$true] %s206
          %212 = dma.hbm_to_vmem [thread:$0]  %s205, 2048, %s207, %s196, 128, 128, 8
        $region24: #{tpu_custom_call.1} parent=19 // pred_fallthru
          _
        // Predicated region
        $region25: #{tpu_custom_call.1} parent=19 // pred_check
          %p213 = pneg %p134
        $region26: #{tpu_custom_call.1} parent=19 // pred_check_branch
          %215 = sbr.rel (%p213) target = $region28
        $region27: #{tpu_custom_call.1} parent=19 // pred_region
          %s216 = sld [smem:[#allocation5 + %s56]]
          %p217 = scmp.lt.s32.totalorder %s216, 1
          %s218 = scalar_select %p217, %s216, 1
          %s219 = scalar_lea.vmem %s9, %s218
          %s220 = sld [smem:[#allocation5 + %s56]]
        $region28: #{tpu_custom_call.1} parent=19 // pred_fallthru
          _
      $region20: #{tpu_custom_call.1} parent=5 // pred_fallthru
        _
      %p221 = scmp.le.s32.totalorder 1, %s48
      %p222 = scmp.lt.s32.totalorder %s48, 3
      %p223 = pnand %p221, %p222
      %p224 = pneg %p223
      // Predicated region
      $region29: #{tpu_custom_call.1} parent=5 // pred_check
        _
      $region30: #{tpu_custom_call.1} parent=5 // pred_check_branch
        %226 = sbr.rel (%p223) target = $region32
      $region31: #{tpu_custom_call.1} parent=5 // pred_region
        %s227 = ssub.s32 %s48, 1
        %s228 = sand.u32 %s99, 1
        %s229 = scalar_lea.sflag [#allocation13], %s228
        %s230 = sand.u32 %s99, 1
        %s231 = smul.addr %s230, 128
        %s232 = scalar_lea.vmem [#allocation12], %s231
        // Predicated region
        $region33: #{tpu_custom_call.1} parent=31 // pred_check
          %p233 = pneg %p112
        $region34: #{tpu_custom_call.1} parent=31 // pred_check_branch
          %235 = sbr.rel (%p233) target = $region36
        $region35: #{tpu_custom_call.1} parent=31 // pred_region
          %236 = dma.done %s229, 2048
        $region36: #{tpu_custom_call.1} parent=31 // pred_fallthru
          _
        %p237 = scmp.lt.s32.totalorder %s57, 0
        %s238 = scalar_select %p237, %s57, 0
        %s239 = smul.addr %s238, 8
        %s240 = scalar_lea.vmem %s7, %s239
        %p241 = pneg %p86
        %p242 = pneg %p83
        %s243 = sand.u32 %s99, 1
        %s244 = scalar_lea.sflag [#allocation13], %s243
        %s245 = sand.u32 %s99, 1
        %s246 = smul.addr %s245, 128
        %s247 = scalar_lea.vmem [#allocation12], %s246
        %p248 = pneg %p112
        %p249 = pneg %p109
        %s250 = sld [smem:[#allocation5 + %s58]]
        %p251 = scmp.lt.s32.totalorder %s250, 1
        %s252 = scalar_select %p251, %s250, 1
        %s253 = scalar_lea.vmem %s9, %s252
        %p254 = pneg %p140
        %p255 = pneg %p137
        %p256 = pneg %p166
        %p257 = pneg %p163
        %p258 = scmp.lt.s32.totalorder %s57, 0
        %s259 = scalar_select %p258, %s57, 0
        %s260 = smul.addr %s259, 8
        %s261 = scalar_lea.vmem %s7, %s260
        %s262 = sld [smem:[#allocation5 + %s58]]
        %p263 = scmp.lt.s32.totalorder %s262, 1
        %s264 = scalar_select %p263, %s262, 1
        %s265 = scalar_lea.vmem %s9, %s264
        %s266 = sld [smem:[#allocation5 + %s58]]
        %p267 = scmp.eq.s32.totalorder %s58, 0
        // Predicated region
        $region37: #{tpu_custom_call.1} parent=31 // pred_check
          %p268 = pneg %p267
        $region38: #{tpu_custom_call.1} parent=31 // pred_check_branch
          %270 = sbr.rel (%p268) target = $region40
        $region39: #{tpu_custom_call.1} parent=31 // pred_region
          %v271 = vld [vmem:[%s261] sm:$0xff]
          %272 = vst [vmem:[#allocation2] sm:$0xff] %v271
        $region40: #{tpu_custom_call.1} parent=31 // pred_fallthru
          _
        %s273 = sld [smem:[#allocation10 + %s58]]
        %s274 = smul.u32 %s273, 8
        %s275 = ssub.s32 1, %s273
        %s276 = smul.u32 %s275, 8
        %s277 = sld [smem:[#allocation6 + %s58]]
        %s278 = sld [smem:[#allocation7 + %s58]]
        %s279 = sshra.s32 %s277, 7
        %s280 = sand.u32 %s277, 127
        %s281 = sadd.s32 %s279, %s274
        %s282 = scalar_lea.vmem [#allocation2], %s281
        %v283 = vld [vmem:[%s282] sm:$0xff]
        %v284 = vld [vmem:[%s232] sm:$0xff]
        %v285 = vld [vmem:[%s232 + $0x8] sm:$0xff]
        %v286 = vld [vmem:[%s232 + $0x10] sm:$0xff]
        %v287 = vld [vmem:[%s232 + $0x18] sm:$0xff]
        %v288 = vld [vmem:[%s232 + $0x20] sm:$0xff]
        %v289 = vld [vmem:[%s232 + $0x28] sm:$0xff]
        %v290 = vld [vmem:[%s232 + $0x30] sm:$0xff]
        %v291 = vld [vmem:[%s232 + $0x38] sm:$0xff]
        %v292 = vld [vmem:[%s232 + $0x40] sm:$0xff]
        %v293 = vld [vmem:[%s232 + $0x48] sm:$0xff]
        %v294 = vld [vmem:[%s232 + $0x50] sm:$0xff]
        %v295 = vld [vmem:[%s232 + $0x58] sm:$0xff]
        %v296 = vld [vmem:[%s232 + $0x60] sm:$0xff]
        %v297 = vld [vmem:[%s232 + $0x68] sm:$0xff]
        %v298 = vld [vmem:[%s232 + $0x70] sm:$0xff]
        %v299 = vld [vmem:[%s232 + $0x78] sm:$0xff]
        %300 = vmatprep.subr.mxu0 0.0
        %301 = vmatpush1.msra.mxu0 %v284
        %302 = vmatprep.subr.mxu0 0.0
        %303 = vmatpush1.msra.mxu0 %v285
        %304 = vmatprep.subr.mxu0 0.0
        %305 = vmatpush1.msra.mxu0 %v286
        %306 = vmatprep.subr.mxu0 0.0
        %307 = vmatpush1.msra.mxu0 %v287
        %308 = vmatprep.subr.mxu0 0.0
        %309 = vmatpush1.msra.mxu0 %v288
        %310 = vmatprep.subr.mxu0 0.0
        %311 = vmatpush1.msra.mxu0 %v289
        %312 = vmatprep.subr.mxu0 0.0
        %313 = vmatpush1.msra.mxu0 %v290
        %314 = vmatprep.subr.mxu0 0.0
        %315 = vmatpush1.msra.mxu0 %v291
        %316 = vmatprep.subr.mxu0 0.0
        %317 = vmatpush1.msra.mxu0 %v292
        %318 = vmatprep.subr.mxu0 0.0
        %319 = vmatpush1.msra.mxu0 %v293
        %320 = vmatprep.subr.mxu0 0.0
        %321 = vmatpush1.msra.mxu0 %v294
        %322 = vmatprep.subr.mxu0 0.0
        %323 = vmatpush1.msra.mxu0 %v295
        %324 = vmatprep.subr.mxu0 0.0
        %325 = vmatpush1.msra.mxu0 %v296
        %326 = vmatprep.subr.mxu0 0.0
        %327 = vmatpush1.msra.mxu0 %v297
        %328 = vmatprep.subr.mxu0 0.0
        %329 = vmatpush1.msra.mxu0 %v298
        %330 = vmatprep.subr.mxu0 0.0
        %331 = vmatpush1.msra.mxu0 %v299
        %332 = vmatprep.subr.mxu0 0.0
        %333 = vmatpush1.msra.mxu0 0.0
        %334 = vmatprep.subr.mxu0 0.0
        %335 = vmatpush1.msra.mxu0 0.0
        %336 = vmatprep.subr.mxu0 0.0
        %337 = vmatpush1.msra.mxu0 0.0
        %338 = vmatprep.subr.mxu0 0.0
        %339 = vmatpush1.msra.mxu0 0.0
        %340 = vmatprep.subr.mxu0 0.0
        %341 = vmatpush1.msra.mxu0 0.0
        %342 = vmatprep.subr.mxu0 0.0
        %343 = vmatpush1.msra.mxu0 0.0
        %344 = vmatprep.subr.mxu0 0.0
        %345 = vmatpush1.msra.mxu0 0.0
        %346 = vmatprep.subr.mxu0 0.0
        %347 = vmatpush1.msra.mxu0 0.0
        %348 = vmatprep.subr.mxu0 0.0
        %349 = vmatpush1.msra.mxu0 0.0
        %350 = vmatprep.subr.mxu0 0.0
        %351 = vmatpush1.msra.mxu0 0.0
        %352 = vmatprep.subr.mxu0 0.0
        %353 = vmatpush1.msra.mxu0 0.0
        %354 = vmatprep.subr.mxu0 0.0
        %355 = vmatpush1.msra.mxu0 0.0
        %356 = vmatprep.subr.mxu0 0.0
        %357 = vmatpush1.msra.mxu0 0.0
        %358 = vmatprep.subr.mxu0 0.0
        %359 = vmatpush1.msra.mxu0 0.0
        %360 = vmatprep.subr.mxu0 0.0
        %361 = vmatpush1.msra.mxu0 0.0
        %362 = vmatprep.subr.mxu0 0.0
        %363 = vmatpush1.msra.mxu0 0.0
        %364 = vmatprep.mubr.f32.mxu0 0.0
        %365 = vmatmul.mubr.f32.gmra.mrb[0].mxu0 %v283
        %v366 = vpop.f32.mrb[0].mxu0
        %v367 = vadd.f32 0.0, %v366
        %v368 = vpop.f32.mrb[0].mxu0
        %369 = vdwg.mxu0
        %s370 = sld [smem:[#allocation8 + %s58]]
        %p371 = scmp.eq.s32.totalorder %s370, 1
        // Predicated region
        $region41: #{tpu_custom_call.1} parent=31 // pred_check
          %p372 = pneg %p371
        $region42: #{tpu_custom_call.1} parent=31 // pred_check_branch
          %374 = sbr.rel (%p372) target = $region44
        $region43: #{tpu_custom_call.1} parent=31 // pred_region
          %375 = vst [vmem:[#allocation3] sm:$0xff] 0.0
        $region44: #{tpu_custom_call.1} parent=31 // pred_fallthru
          _
        %v376 = vld [vmem:[#allocation3] sm:$0xff]
        %v377 = vadd.f32 %v376, %v367
        %378 = vst [vmem:[#allocation3] sm:$0xff] %v377
        %s379 = sld [smem:[#allocation9 + %s58]]
        %p380 = scmp.eq.s32.totalorder %s379, 1
        // Predicated region
        $region45: #{tpu_custom_call.1} parent=31 // pred_check
          %p381 = pneg %p380
        $region46: #{tpu_custom_call.1} parent=31 // pred_check_branch
          %383 = sbr.rel (%p381) target = $region48
        $region47: #{tpu_custom_call.1} parent=31 // pred_region
          %v384 = vld [vmem:[#allocation3] sm:$0xff]
          %v385 = vld [vmem:[%s265] sm:$0x1]
          %v387 = vlaneseq
          %v388 = vshrl.u32 %v387, 7
          %v389 = vsub.s32 0, %v388
          %v390 = vrot.slane %v385, %v389
          %v392 = vadd.f32 %v384, %v390
          %v393 = vmax.f32 %v392, 0.0
          %s394 = sld [smem:[#allocation11 + %s58]]
          %p395 = scmp.eq.s32.totalorder %s394, 0
          // Predicated region
          $region49: #{tpu_custom_call.1} parent=47 // pred_check
            %p396 = pneg %p395
          $region50: #{tpu_custom_call.1} parent=47 // pred_check_branch
            %398 = sbr.rel (%p396) target = $region52
          $region51: #{tpu_custom_call.1} parent=47 // pred_region
            %s399 = sshra.s32 %s278, 7
            %s400 = sand.u32 %s278, 127
            %s401 = sadd.s32 %s399, %s276
            %s402 = scalar_lea.vmem [#allocation2], %s401
            %403 = vst [vmem:[%s402] sm:$0xff] %v393
          $region52: #{tpu_custom_call.1} parent=47 // pred_fallthru
            _
          %s404 = sld [smem:[#allocation11 + %s58]]
          %p405 = scmp.eq.s32.totalorder %s404, 1
          // Predicated region
          $region53: #{tpu_custom_call.1} parent=47 // pred_check
            %p406 = pneg %p405
          $region54: #{tpu_custom_call.1} parent=47 // pred_check_branch
            %408 = sbr.rel (%p406) target = $region56
          $region55: #{tpu_custom_call.1} parent=47 // pred_region
            %s409 = sshra.s32 %s278, 7
            %s410 = sand.u32 %s278, 127
            %s411 = scalar_lea.vmem [#allocation15], %s409
            %412 = vst [vmem:[%s411] sm:$0xff] %v393
          $region56: #{tpu_custom_call.1} parent=47 // pred_fallthru
            _
        $region48: #{tpu_custom_call.1} parent=31 // pred_fallthru
          _
        // Predicated region
        $region57: #{tpu_custom_call.1} parent=31 // pred_check
          %p413 = pneg %p163
        $region58: #{tpu_custom_call.1} parent=31 // pred_check_branch
          %415 = sbr.rel (%p413) target = $region60
        $region59: #{tpu_custom_call.1} parent=31 // pred_region
          %s417 = ssub.s32 128, 128
          %418 = vsyncadd [#allocation14], %s417
          %s419 = smul.addr %s57, 128
          %s420 = scalar_lea.hbm %s10, %s419
          %s422 = sshll.u32 [#allocation15], 4
          %s423 = int_to_ptr.vmem [resolvable:$true] %s422
          %425 = dma.vmem_to_hbm [thread:$0]  %s423, 128, %s420, [#allocation14]
        $region60: #{tpu_custom_call.1} parent=31 // pred_fallthru
          _
        // Predicated region
        $region61: #{tpu_custom_call.1} parent=31 // pred_check
          %p426 = pneg %p163
        $region62: #{tpu_custom_call.1} parent=31 // pred_check_branch
          %428 = sbr.rel (%p426) target = $region64
        $region63: #{tpu_custom_call.1} parent=31 // pred_region
          %429 = dma.done [#allocation14], 128
        $region64: #{tpu_custom_call.1} parent=31 // pred_fallthru
          _
      $region32: #{tpu_custom_call.1} parent=5 // pred_fallthru
        _
      %p430 = scmp.le.s32.totalorder 2, %s48
      // Predicated region
      $region65: #{tpu_custom_call.1} parent=5 // pred_check
        %p431 = pneg %p430
      $region66: #{tpu_custom_call.1} parent=5 // pred_check_branch
        %433 = sbr.rel (%p431) target = $region68
      $region67: #{tpu_custom_call.1} parent=5 // pred_region
        %s434 = ssub.s32 %s48, 2
      $region68: #{tpu_custom_call.1} parent=5 // pred_fallthru
        _
    $region6: #{tpu_custom_call.1} parent=1 // loop_footer
      %s52 = sadd.s32 1, %s48
    $region7: #{tpu_custom_call.1} parent=1 // loop_footer_branch
      %47 = sbr.rel target = $region3
    $region8: #{tpu_custom_call.1} parent=1 // loop_exit
      _
    %435 = vsyncpa [#allocation13], 1
    %s436 = scalar_lea.sflag [#allocation13], 1
    %437 = vsyncpa %s436, 1
    %438 = vsyncpa [#allocation14], 1
    %s439 = scalar_lea.sflag [#allocation14], 1
    %440 = vsyncpa %s439, 1

</llo_original>
